<compile_context>
chip_gen: v7x
topology: tpu7x:2x2x1
jax: 0.10.0
libtpu: 0.0.40
codegen_flags: <defaults>
</compile_context>

<pallas_src>
from functools import partial

import jax
import jax.numpy as jnp
from jax.experimental import pallas as pl
from jax.experimental.pallas import tpu as pltpu

N_LAYERS = 6
F_PAD = 32            # internal hidden width (>= 25), multiple of 8 sublanes
X_PAD = 8             # input slab rows (2 real features + ones row), sublane aligned
ONE_ROW_X = X_PAD - 1  # row of the input slab holding the constant 1.0
ONE_ROW_H = F_PAD - 1  # row of the hidden state holding the constant 1.0


def _mlp_kernel(x_ref, w_ref, o_ref):
    # x_ref: (X_PAD, TB)   w_ref: (6, F_PAD, F_PAD)   o_ref: (1, TB)
    # Layer 0: only the first X_PAD weight columns touch the (X_PAD, TB) input.
    h = jnp.dot(w_ref[0][:, :X_PAD], x_ref[...], preferred_element_type=jnp.float32)
    h = jnp.maximum(h, 0.0)
    for l in range(1, N_LAYERS):
        h = jnp.dot(w_ref[l], h, preferred_element_type=jnp.float32)
        if l < N_LAYERS - 1:
            h = jnp.maximum(h, 0.0)
    # Only output row 0 is the real fc6 output (fc6 has out_features=1).
    o_ref[...] = h[0:1, :].astype(o_ref.dtype)


def _round_up(n, m):
    return ((n + m - 1) // m) * m


def _cdiv(a, b):
    return -(-a // b)


def pack_params(params):
    """params: list of (W(in,out), b(1,out)) -> one padded (6,32,32) weight slab.

    Weights are stored (out, in).  Biases are folded in: the constant-1 row of
    the activations (row ONE_ROW_X of the input slab / row ONE_ROW_H of h)
    picks up each layer's bias from the corresponding weight column, and a 1.0
    in that weight row propagates the constant to the next layer.
    """
    w_slab = jnp.zeros((N_LAYERS, F_PAD, F_PAD), jnp.float32)
    for l, (w, b) in enumerate(params):
        fan_in, fan_out = w.shape
        w_slab = w_slab.at[l, :fan_out, :fan_in].set(w.T.astype(jnp.float32))
        bias_col = ONE_ROW_X if l == 0 else ONE_ROW_H
        w_slab = w_slab.at[l, :fan_out, bias_col].set(b.reshape(-1).astype(jnp.float32))
        if l < N_LAYERS - 1:
            # Keep the constant-1 row alive for the next layer's bias pickup.
            w_slab = w_slab.at[l, ONE_ROW_H, bias_col].set(1.0)
    return w_slab


@partial(jax.jit, static_argnames=("block_b",))
def net_forward(x, params, *, block_b=4096):
    """x: (B, 2) float32.  params: list of (W(in,out), b(1,out)) for 6 layers.

    Returns (B, 1) float32, matching the PyTorch Net forward pass.
    """
    B, f_in = x.shape

    # Balanced, lane-aligned batch tiling: waste < 128 samples per tile, and
    # at least 2 tiles when B allows so v7x megacore gets both TensorCores busy.
    b_pad0 = _round_up(B, 128)
    n_tiles = max(_cdiv(b_pad0, block_b), 2 if b_pad0 >= 256 else 1)
    tb = _round_up(_cdiv(b_pad0, n_tiles), 128)
    b_pad = tb * n_tiles

    w_slab = pack_params(params)

    # Feature-major, lane-dense input slab: (X_PAD, B_pad) with a constant-1
    # row for the first-layer bias.  Only 8 rows -> minimal HBM traffic.
    xt = jnp.zeros((X_PAD, b_pad), jnp.float32)
    xt = xt.at[:f_in, :B].set(x.T.astype(jnp.float32))
    xt = xt.at[ONE_ROW_X, :].set(1.0)

    out_t = pl.pallas_call(
        _mlp_kernel,
        out_shape=jax.ShapeDtypeStruct((1, b_pad), jnp.float32),
        grid_spec=pltpu.PrefetchScalarGridSpec(
            num_scalar_prefetch=0,
            grid=(n_tiles,),
            in_specs=[
                # x tile marches over the batch; the weight slab stays resident.
                pl.BlockSpec((X_PAD, tb), lambda i: (0, i)),
                pl.BlockSpec((N_LAYERS, F_PAD, F_PAD), lambda i: (0, 0, 0)),
            ],
            out_specs=pl.BlockSpec((1, tb), lambda i: (0, i)),
        ),
        compiler_params=pltpu.CompilerParams(
            dimension_semantics=("parallel",),      # megacore split on v7x
            vmem_limit_bytes=32 * 1024 * 1024,      # headroom vs v5e's 16 MiB default
        ),
    )(xt, w_slab)

    return out_t[:, :B].T  # (B, 1)


def init_params(key):
    """Deterministic init mimicking nn.Linear default (uniform +/- 1/sqrt(fan_in))."""
    dims = [(2, 25), (25, 25), (25, 25), (25, 25), (25, 25), (25, 1)]
    params = []
    for (fan_in, fan_out) in dims:
        key, kw, kb = jax.random.split(key, 3)
        bound = 1.0 / (fan_in ** 0.5)
        w = jax.random.uniform(kw, (fan_in, fan_out), jnp.float32, -bound, bound)
        b = jax.random.uniform(kb, (1, fan_out), jnp.float32, -bound, bound)
        params.append((w, b))
    return params


def reference_forward(x, params):
    h = x
    for i, (w, b) in enumerate(params):
        h = h @ w + b
        if i < len(params) - 1:
            h = jnp.maximum(h, 0.0)
    return h


if __name__ == "__main__":
    key = jax.random.PRNGKey(0)
    key, kx1, kx2 = jax.random.split(key, 3)
    params = init_params(key)

    # Small-batch case (single tile, exercises batch padding + bias folding).
    B1 = 8
    x1 = jax.random.normal(kx1, (B1, 2), jnp.float32)
    out1 = jax.block_until_ready(net_forward(x1, params))
    ref1 = reference_forward(x1, params)
    assert out1.shape == (B1, 1), out1.shape
    assert jnp.allclose(out1, ref1, atol=1e-5, rtol=1e-5)

    # Multi-tile case (grid of 2, exercises the parallel pipelined grid).
    B2 = 300
    x2 = jax.random.normal(kx2, (B2, 2), jnp.float32)
    out2 = jax.block_until_ready(net_forward(x2, params))
    ref2 = reference_forward(x2, params)
    assert out2.shape == (B2, 1), out2.shape
    assert jnp.allclose(out2, ref2, atol=1e-5, rtol=1e-5)

    print("KERNEL_OK")
</pallas_src>

<mosaic_0001>
module attributes {stable_mosaic.version = 11 : i64} {
  func.func @_mlp_kernel(%arg0: i32, %arg1: memref<8x128xf32, #tpu.memory_space<vmem>>, %arg2: memref<6x32x32xf32, #tpu.memory_space<vmem>>, %arg3: memref<1x128xf32, #tpu.memory_space<vmem>>) attributes {dimension_semantics = [#tpu.dimension_semantics<parallel>], iteration_bounds = array<i64: 1>, scalar_prefetch = 0 : i64, scratch_operands = 0 : i64, tpu.core_type = #tpu.core_type<tc>, window_params = [{transform_indices = @transform_0, window_bounds = array<i64: 8, 128>}, {pipeline_mode = #tpu.pipeline_mode<synchronous>, transform_indices = @transform_1, window_bounds = array<i64: 6, 32, 32>}, {transform_indices = @transform_2, window_bounds = array<i64: 1, 128>}]} {
    %c0 = arith.constant 0 : index
    %c0_0 = arith.constant 0 : index
    %c0_1 = arith.constant 0 : index
    %0 = vector.load %arg2[%c0, %c0_0, %c0_1] : memref<6x32x32xf32, #tpu.memory_space<vmem>>, vector<1x32x32xf32>
    %1 = vector.shape_cast %0 : vector<1x32x32xf32> to vector<32x32xf32>
    %2 = vector.extract_strided_slice %1 {offsets = [0, 0], sizes = [32, 8], strides = [1, 1]} : vector<32x32xf32> to vector<32x8xf32>
    %c0_2 = arith.constant 0 : index
    %c0_3 = arith.constant 0 : index
    %3 = vector.load %arg1[%c0_2, %c0_3] : memref<8x128xf32, #tpu.memory_space<vmem>>, vector<8x128xf32>
    %cst = arith.constant dense<0.000000e+00> : vector<32x128xf32>
    %4 = tpu.matmul %2, %3, %cst {dimension_numbers = #tpu.dot_dimension_numbers<[1], [0], [0], [1], [0, 0, 1, 1], [], []>} : vector<32x8xf32>, vector<8x128xf32>, vector<32x128xf32> -> vector<32x128xf32>
    %cst_4 = arith.constant 0.000000e+00 : f32
    %5 = vector.broadcast %cst_4 : f32 to vector<32x128xf32>
    %6 = arith.maximumf %4, %5 : vector<32x128xf32>
    %c1 = arith.constant 1 : index
    %c0_5 = arith.constant 0 : index
    %c0_6 = arith.constant 0 : index
    %7 = vector.load %arg2[%c1, %c0_5, %c0_6] : memref<6x32x32xf32, #tpu.memory_space<vmem>>, vector<1x32x32xf32>
    %8 = vector.shape_cast %7 : vector<1x32x32xf32> to vector<32x32xf32>
    %cst_7 = arith.constant dense<0.000000e+00> : vector<32x128xf32>
    %9 = tpu.matmul %8, %6, %cst_7 {dimension_numbers = #tpu.dot_dimension_numbers<[1], [0], [0], [1], [0, 0, 1, 1], [], []>} : vector<32x32xf32>, vector<32x128xf32>, vector<32x128xf32> -> vector<32x128xf32>
    %cst_8 = arith.constant 0.000000e+00 : f32
    %10 = vector.broadcast %cst_8 : f32 to vector<32x128xf32>
    %11 = arith.maximumf %9, %10 : vector<32x128xf32>
    %c2 = arith.constant 2 : index
    %c0_9 = arith.constant 0 : index
    %c0_10 = arith.constant 0 : index
    %12 = vector.load %arg2[%c2, %c0_9, %c0_10] : memref<6x32x32xf32, #tpu.memory_space<vmem>>, vector<1x32x32xf32>
    %13 = vector.shape_cast %12 : vector<1x32x32xf32> to vector<32x32xf32>
    %cst_11 = arith.constant dense<0.000000e+00> : vector<32x128xf32>
    %14 = tpu.matmul %13, %11, %cst_11 {dimension_numbers = #tpu.dot_dimension_numbers<[1], [0], [0], [1], [0, 0, 1, 1], [], []>} : vector<32x32xf32>, vector<32x128xf32>, vector<32x128xf32> -> vector<32x128xf32>
    %cst_12 = arith.constant 0.000000e+00 : f32
    %15 = vector.broadcast %cst_12 : f32 to vector<32x128xf32>
    %16 = arith.maximumf %14, %15 : vector<32x128xf32>
    %c3 = arith.constant 3 : index
    %c0_13 = arith.constant 0 : index
    %c0_14 = arith.constant 0 : index
    %17 = vector.load %arg2[%c3, %c0_13, %c0_14] : memref<6x32x32xf32, #tpu.memory_space<vmem>>, vector<1x32x32xf32>
    %18 = vector.shape_cast %17 : vector<1x32x32xf32> to vector<32x32xf32>
    %cst_15 = arith.constant dense<0.000000e+00> : vector<32x128xf32>
    %19 = tpu.matmul %18, %16, %cst_15 {dimension_numbers = #tpu.dot_dimension_numbers<[1], [0], [0], [1], [0, 0, 1, 1], [], []>} : vector<32x32xf32>, vector<32x128xf32>, vector<32x128xf32> -> vector<32x128xf32>
    %cst_16 = arith.constant 0.000000e+00 : f32
    %20 = vector.broadcast %cst_16 : f32 to vector<32x128xf32>
    %21 = arith.maximumf %19, %20 : vector<32x128xf32>
    %c4 = arith.constant 4 : index
    %c0_17 = arith.constant 0 : index
    %c0_18 = arith.constant 0 : index
    %22 = vector.load %arg2[%c4, %c0_17, %c0_18] : memref<6x32x32xf32, #tpu.memory_space<vmem>>, vector<1x32x32xf32>
    %23 = vector.shape_cast %22 : vector<1x32x32xf32> to vector<32x32xf32>
    %cst_19 = arith.constant dense<0.000000e+00> : vector<32x128xf32>
    %24 = tpu.matmul %23, %21, %cst_19 {dimension_numbers = #tpu.dot_dimension_numbers<[1], [0], [0], [1], [0, 0, 1, 1], [], []>} : vector<32x32xf32>, vector<32x128xf32>, vector<32x128xf32> -> vector<32x128xf32>
    %cst_20 = arith.constant 0.000000e+00 : f32
    %25 = vector.broadcast %cst_20 : f32 to vector<32x128xf32>
    %26 = arith.maximumf %24, %25 : vector<32x128xf32>
    %c5 = arith.constant 5 : index
    %c0_21 = arith.constant 0 : index
    %c0_22 = arith.constant 0 : index
    %27 = vector.load %arg2[%c5, %c0_21, %c0_22] : memref<6x32x32xf32, #tpu.memory_space<vmem>>, vector<1x32x32xf32>
    %28 = vector.shape_cast %27 : vector<1x32x32xf32> to vector<32x32xf32>
    %cst_23 = arith.constant dense<0.000000e+00> : vector<32x128xf32>
    %29 = tpu.matmul %28, %26, %cst_23 {dimension_numbers = #tpu.dot_dimension_numbers<[1], [0], [0], [1], [0, 0, 1, 1], [], []>} : vector<32x32xf32>, vector<32x128xf32>, vector<32x128xf32> -> vector<32x128xf32>
    %30 = vector.extract_strided_slice %29 {offsets = [0, 0], sizes = [1, 128], strides = [1, 1]} : vector<32x128xf32> to vector<1x128xf32>
    %c0_24 = arith.constant 0 : index
    %c0_25 = arith.constant 0 : index
    %31 = vector.load %arg3[%c0_24, %c0_25] : memref<1x128xf32, #tpu.memory_space<vmem>>, vector<1x128xf32>
    tpu.vector_store %arg3[%c0_24, %c0_25], %30 {strides = array<i32>} : memref<1x128xf32, #tpu.memory_space<vmem>>, vector<1x128xf32>,
    return
  }
  func.func @transform_0(%arg0: i32) -> (i32, i32) {
    %c0_i32 = arith.constant 0 : i32
    %c0_i32_0 = arith.constant 0 : i32
    return %c0_i32, %arg0 : i32, i32
  }
  func.func @transform_1(%arg0: i32) -> (i32, i32, i32) {
    %c0_i32 = arith.constant 0 : i32
    %c0_i32_0 = arith.constant 0 : i32
    %c0_i32_1 = arith.constant 0 : i32
    %c0_i32_2 = arith.constant 0 : i32
    return %c0_i32, %c0_i32_0, %c0_i32_1 : i32, i32, i32
  }
  func.func @transform_2(%arg0: i32) -> (i32, i32) {
    %c0_i32 = arith.constant 0 : i32
    %c0_i32_0 = arith.constant 0 : i32
    return %c0_i32, %arg0 : i32, i32
  }
}

</mosaic_0001>

<llo_original>
// kernel: net_forward.1
$region0: #{net_forward.1}
  #allocation0 [shape = 'u32[]', space=smem, size = 0x4, offset = 0x4, fixed_abs, tag = 'smem constant byte address 0x4 - core index']
  #allocation1 [shape = 'u32[144,128]{1,0:T(1,128)}', space=vmem, size = 0x12000, scoped, tag = 'internal scratch']
  %s0 = inlined_call_operand.vmem [shape: f32[8,128], index: 0, kind: input, shape index: {}]
  %s1 = inlined_call_operand.vmem [shape: f32[6,32,32], index: 1, kind: input, shape index: {}]
  %s2 = inlined_call_operand.vmem [shape: f32[1,128], index: 2, kind: output, shape index: {}]
  %s3 = sld [smem:[#allocation0]]
  $region18: #{net_forward.1} parent=0
    _
  %s5 = ssub.s32 1, %s3
  %s6 = scalar_select 0, %s5, %s3
  // Predicated region
  $region2: #{net_forward.1} parent=0 // pred_check
    _
  $region3: #{net_forward.1} parent=0 // pred_check_branch
    %8 = sbr.rel (0) target = $region5
  $region4: #{net_forward.1} parent=0 // pred_region
    _
  $region5: #{net_forward.1} parent=0 // pred_fallthru
    _
  // Predicated region
  $region6: #{net_forward.1} parent=0 // pred_check
    _
  $region7: #{net_forward.1} parent=0 // pred_check_branch
    %10 = sbr.rel (0) target = $region9
  $region8: #{net_forward.1} parent=0 // pred_region
    _
  $region9: #{net_forward.1} parent=0 // pred_fallthru
    _
  %v11 = vld [vmem:[%s1] sm:$0xff]
  %v12 = vld [vmem:[%s1 + $0x8] sm:$0xff]
  %v13 = vld [vmem:[%s1 + $0x10] sm:$0xff]
  %v14 = vld [vmem:[%s1 + $0x18] sm:$0xff]
  %v15 = vld [vmem:[%s0] sm:$0xff]
  %vm16 = vcmask 64512
  %v18 = vsel %vm16, %v11, 0
  %v21 = vsel %vm16, %v12, 0
  %v24 = vsel %vm16, %v13, 0
  %v27 = vsel %vm16, %v14, 0
  %29 = vmatprep.subr.mxu0 0.0
  %30 = vmatpush1.msra.mxu0 %v15
  %31 = vmatprep.subr.mxu0 0.0
  %32 = vmatpush1.msra.mxu0 0.0
  %33 = vmatprep.subr.mxu0 0.0
  %34 = vmatpush1.msra.mxu0 0.0
  %35 = vmatprep.subr.mxu0 0.0
  %36 = vmatpush1.msra.mxu0 0.0
  %37 = vmatprep.subr.mxu0 0.0
  %38 = vmatpush1.msra.mxu0 0.0
  %39 = vmatprep.subr.mxu0 0.0
  %40 = vmatpush1.msra.mxu0 0.0
  %41 = vmatprep.subr.mxu0 0.0
  %42 = vmatpush1.msra.mxu0 0.0
  %43 = vmatprep.subr.mxu0 0.0
  %44 = vmatpush1.msra.mxu0 0.0
  %45 = vmatprep.subr.mxu0 0.0
  %46 = vmatpush1.msra.mxu0 0.0
  %47 = vmatprep.subr.mxu0 0.0
  %48 = vmatpush1.msra.mxu0 0.0
  %49 = vmatprep.subr.mxu0 0.0
  %50 = vmatpush1.msra.mxu0 0.0
  %51 = vmatprep.subr.mxu0 0.0
  %52 = vmatpush1.msra.mxu0 0.0
  %53 = vmatprep.subr.mxu0 0.0
  %54 = vmatpush1.msra.mxu0 0.0
  %55 = vmatprep.subr.mxu0 0.0
  %56 = vmatpush1.msra.mxu0 0.0
  %57 = vmatprep.subr.mxu0 0.0
  %58 = vmatpush1.msra.mxu0 0.0
  %59 = vmatprep.subr.mxu0 0.0
  %60 = vmatpush1.msra.mxu0 0.0
  %61 = vmatprep.subr.mxu0 0.0
  %62 = vmatpush1.msra.mxu0 0.0
  %63 = vmatprep.subr.mxu0 0.0
  %64 = vmatpush1.msra.mxu0 0.0
  %65 = vmatprep.subr.mxu0 0.0
  %66 = vmatpush1.msra.mxu0 0.0
  %67 = vmatprep.subr.mxu0 0.0
  %68 = vmatpush1.msra.mxu0 0.0
  %69 = vmatprep.subr.mxu0 0.0
  %70 = vmatpush1.msra.mxu0 0.0
  %71 = vmatprep.subr.mxu0 0.0
  %72 = vmatpush1.msra.mxu0 0.0
  %73 = vmatprep.subr.mxu0 0.0
  %74 = vmatpush1.msra.mxu0 0.0
  %75 = vmatprep.subr.mxu0 0.0
  %76 = vmatpush1.msra.mxu0 0.0
  %77 = vmatprep.subr.mxu0 0.0
  %78 = vmatpush1.msra.mxu0 0.0
  %79 = vmatprep.subr.mxu0 0.0
  %80 = vmatpush1.msra.mxu0 0.0
  %81 = vmatprep.subr.mxu0 0.0
  %82 = vmatpush1.msra.mxu0 0.0
  %83 = vmatprep.subr.mxu0 0.0
  %84 = vmatpush1.msra.mxu0 0.0
  %85 = vmatprep.subr.mxu0 0.0
  %86 = vmatpush1.msra.mxu0 0.0
  %87 = vmatprep.subr.mxu0 0.0
  %88 = vmatpush1.msra.mxu0 0.0
  %89 = vmatprep.subr.mxu0 0.0
  %90 = vmatpush1.msra.mxu0 0.0
  %91 = vmatprep.subr.mxu0 0.0
  %92 = vmatpush1.msra.mxu0 0.0
  %93 = vmatprep.mubr.f32.mxu0 0.0
  %94 = vmatmul.mubr.f32.gmra.mrb[0].mxu0 %v18
  %v95 = vpop.f32.mrb[0].mxu0
  %v96 = vadd.f32 0.0, %v95
  %v97 = vpop.f32.mrb[0].mxu0
  %98 = vmatprep.mubr.f32.mxu0 0.0
  %99 = vmatmul.mubr.f32.gmra.mrb[0].mxu0 %v21
  %v100 = vpop.f32.mrb[0].mxu0
  %v101 = vadd.f32 0.0, %v100
  %v102 = vpop.f32.mrb[0].mxu0
  %103 = vmatprep.mubr.f32.mxu0 0.0
  %104 = vmatmul.mubr.f32.gmra.mrb[0].mxu0 %v24
  %v105 = vpop.f32.mrb[0].mxu0
  %v106 = vadd.f32 0.0, %v105
  %v107 = vpop.f32.mrb[0].mxu0
  %108 = vmatprep.mubr.f32.mxu0 0.0
  %109 = vmatmul.mubr.f32.gmra.mrb[0].mxu0 %v27
  %v110 = vpop.f32.mrb[0].mxu0
  %v111 = vadd.f32 0.0, %v110
  %v112 = vpop.f32.mrb[0].mxu0
  %113 = vdwg.mxu0
  %v114 = vmax.f32 %v96, 0.0
  %v115 = vmax.f32 %v101, 0.0
  %v116 = vmax.f32 %v106, 0.0
  %v117 = vmax.f32 %v111, 0.0
  %s118 = scalar_lea.vmem %s1, 32
  %v119 = vld [vmem:[%s118] sm:$0xff]
  %v120 = vld [vmem:[%s118 + $0x8] sm:$0xff]
  %v121 = vld [vmem:[%s118 + $0x10] sm:$0xff]
  %v122 = vld [vmem:[%s118 + $0x18] sm:$0xff]
  %vm123 = vcmask 261120
  %v125 = vsel %vm123, %v119, 0
  %v128 = vsel %vm123, %v120, 0
  %v131 = vsel %vm123, %v121, 0
  %v134 = vsel %vm123, %v122, 0
  %136 = vmatprep.subr.mxu0 0.0
  %137 = vmatpush1.msra.mxu0 %v114
  %138 = vmatprep.subr.mxu0 0.0
  %139 = vmatpush1.msra.mxu0 %v115
  %140 = vmatprep.subr.mxu0 0.0
  %141 = vmatpush1.msra.mxu0 %v116
  %142 = vmatprep.subr.mxu0 0.0
  %143 = vmatpush1.msra.mxu0 %v117
  %144 = vmatprep.subr.mxu0 0.0
  %145 = vmatpush1.msra.mxu0 0.0
  %146 = vmatprep.subr.mxu0 0.0
  %147 = vmatpush1.msra.mxu0 0.0
  %148 = vmatprep.subr.mxu0 0.0
  %149 = vmatpush1.msra.mxu0 0.0
  %150 = vmatprep.subr.mxu0 0.0
  %151 = vmatpush1.msra.mxu0 0.0
  %152 = vmatprep.subr.mxu0 0.0
  %153 = vmatpush1.msra.mxu0 0.0
  %154 = vmatprep.subr.mxu0 0.0
  %155 = vmatpush1.msra.mxu0 0.0
  %156 = vmatprep.subr.mxu0 0.0
  %157 = vmatpush1.msra.mxu0 0.0
  %158 = vmatprep.subr.mxu0 0.0
  %159 = vmatpush1.msra.mxu0 0.0
  %160 = vmatprep.subr.mxu0 0.0
  %161 = vmatpush1.msra.mxu0 0.0
  %162 = vmatprep.subr.mxu0 0.0
  %163 = vmatpush1.msra.mxu0 0.0
  %164 = vmatprep.subr.mxu0 0.0
  %165 = vmatpush1.msra.mxu0 0.0
  %166 = vmatprep.subr.mxu0 0.0
  %167 = vmatpush1.msra.mxu0 0.0
  %168 = vmatprep.subr.mxu0 0.0
  %169 = vmatpush1.msra.mxu0 0.0
  %170 = vmatprep.subr.mxu0 0.0
  %171 = vmatpush1.msra.mxu0 0.0
  %172 = vmatprep.subr.mxu0 0.0
  %173 = vmatpush1.msra.mxu0 0.0
  %174 = vmatprep.subr.mxu0 0.0
  %175 = vmatpush1.msra.mxu0 0.0
  %176 = vmatprep.subr.mxu0 0.0
  %177 = vmatpush1.msra.mxu0 0.0
  %178 = vmatprep.subr.mxu0 0.0
  %179 = vmatpush1.msra.mxu0 0.0
  %180 = vmatprep.subr.mxu0 0.0
  %181 = vmatpush1.msra.mxu0 0.0
  %182 = vmatprep.subr.mxu0 0.0
  %183 = vmatpush1.msra.mxu0 0.0
  %184 = vmatprep.subr.mxu0 0.0
  %185 = vmatpush1.msra.mxu0 0.0
  %186 = vmatprep.subr.mxu0 0.0
  %187 = vmatpush1.msra.mxu0 0.0
  %188 = vmatprep.subr.mxu0 0.0
  %189 = vmatpush1.msra.mxu0 0.0
  %190 = vmatprep.subr.mxu0 0.0
  %191 = vmatpush1.msra.mxu0 0.0
  %192 = vmatprep.subr.mxu0 0.0
  %193 = vmatpush1.msra.mxu0 0.0
  %194 = vmatprep.subr.mxu0 0.0
  %195 = vmatpush1.msra.mxu0 0.0
  %196 = vmatprep.subr.mxu0 0.0
  %197 = vmatpush1.msra.mxu0 0.0
  %198 = vmatprep.subr.mxu0 0.0
  %199 = vmatpush1.msra.mxu0 0.0
  %200 = vmatprep.mubr.f32.mxu0 0.0
  %201 = vmatmul.mubr.f32.gmra.mrb[0].mxu0 %v125
  %v202 = vpop.f32.mrb[0].mxu0
  %v203 = vadd.f32 0.0, %v202
  %v204 = vpop.f32.mrb[0].mxu0
  %205 = vmatprep.mubr.f32.mxu0 0.0
  %206 = vmatmul.mubr.f32.gmra.mrb[0].mxu0 %v128
  %v207 = vpop.f32.mrb[0].mxu0
  %v208 = vadd.f32 0.0, %v207
  %v209 = vpop.f32.mrb[0].mxu0
  %210 = vmatprep.mubr.f32.mxu0 0.0
  %211 = vmatmul.mubr.f32.gmra.mrb[0].mxu0 %v131
  %v212 = vpop.f32.mrb[0].mxu0
  %v213 = vadd.f32 0.0, %v212
  %v214 = vpop.f32.mrb[0].mxu0
  %215 = vmatprep.mubr.f32.mxu0 0.0
  %216 = vmatmul.mubr.f32.gmra.mrb[0].mxu0 %v134
  %v217 = vpop.f32.mrb[0].mxu0
  %v218 = vadd.f32 0.0, %v217
  %v219 = vpop.f32.mrb[0].mxu0
  %220 = vdwg.mxu0
  %v221 = vmax.f32 %v203, 0.0
  %v222 = vmax.f32 %v208, 0.0
  %v223 = vmax.f32 %v213, 0.0
  %v224 = vmax.f32 %v218, 0.0
  %s225 = scalar_lea.vmem %s1, 64
  %v226 = vld [vmem:[%s225] sm:$0xff]
  %v227 = vld [vmem:[%s225 + $0x8] sm:$0xff]
  %v228 = vld [vmem:[%s225 + $0x10] sm:$0xff]
  %v229 = vld [vmem:[%s225 + $0x18] sm:$0xff]
  %v231 = vsel %vm123, %v226, 0
  %v234 = vsel %vm123, %v227, 0
  %v237 = vsel %vm123, %v228, 0
  %v240 = vsel %vm123, %v229, 0
  %242 = vmatprep.subr.mxu0 0.0
  %243 = vmatpush1.msra.mxu0 %v221
  %244 = vmatprep.subr.mxu0 0.0
  %245 = vmatpush1.msra.mxu0 %v222
  %246 = vmatprep.subr.mxu0 0.0
  %247 = vmatpush1.msra.mxu0 %v223
  %248 = vmatprep.subr.mxu0 0.0
  %249 = vmatpush1.msra.mxu0 %v224
  %250 = vmatprep.subr.mxu0 0.0
  %251 = vmatpush1.msra.mxu0 0.0
  %252 = vmatprep.subr.mxu0 0.0
  %253 = vmatpush1.msra.mxu0 0.0
  %254 = vmatprep.subr.mxu0 0.0
  %255 = vmatpush1.msra.mxu0 0.0
  %256 = vmatprep.subr.mxu0 0.0
  %257 = vmatpush1.msra.mxu0 0.0
  %258 = vmatprep.subr.mxu0 0.0
  %259 = vmatpush1.msra.mxu0 0.0
  %260 = vmatprep.subr.mxu0 0.0
  %261 = vmatpush1.msra.mxu0 0.0
  %262 = vmatprep.subr.mxu0 0.0
  %263 = vmatpush1.msra.mxu0 0.0
  %264 = vmatprep.subr.mxu0 0.0
  %265 = vmatpush1.msra.mxu0 0.0
  %266 = vmatprep.subr.mxu0 0.0
  %267 = vmatpush1.msra.mxu0 0.0
  %268 = vmatprep.subr.mxu0 0.0
  %269 = vmatpush1.msra.mxu0 0.0
  %270 = vmatprep.subr.mxu0 0.0
  %271 = vmatpush1.msra.mxu0 0.0
  %272 = vmatprep.subr.mxu0 0.0
  %273 = vmatpush1.msra.mxu0 0.0
  %274 = vmatprep.subr.mxu0 0.0
  %275 = vmatpush1.msra.mxu0 0.0
  %276 = vmatprep.subr.mxu0 0.0
  %277 = vmatpush1.msra.mxu0 0.0
  %278 = vmatprep.subr.mxu0 0.0
  %279 = vmatpush1.msra.mxu0 0.0
  %280 = vmatprep.subr.mxu0 0.0
  %281 = vmatpush1.msra.mxu0 0.0
  %282 = vmatprep.subr.mxu0 0.0
  %283 = vmatpush1.msra.mxu0 0.0
  %284 = vmatprep.subr.mxu0 0.0
  %285 = vmatpush1.msra.mxu0 0.0
  %286 = vmatprep.subr.mxu0 0.0
  %287 = vmatpush1.msra.mxu0 0.0
  %288 = vmatprep.subr.mxu0 0.0
  %289 = vmatpush1.msra.mxu0 0.0
  %290 = vmatprep.subr.mxu0 0.0
  %291 = vmatpush1.msra.mxu0 0.0
  %292 = vmatprep.subr.mxu0 0.0
  %293 = vmatpush1.msra.mxu0 0.0
  %294 = vmatprep.subr.mxu0 0.0
  %295 = vmatpush1.msra.mxu0 0.0
  %296 = vmatprep.subr.mxu0 0.0
  %297 = vmatpush1.msra.mxu0 0.0
  %298 = vmatprep.subr.mxu0 0.0
  %299 = vmatpush1.msra.mxu0 0.0
  %300 = vmatprep.subr.mxu0 0.0
  %301 = vmatpush1.msra.mxu0 0.0
  %302 = vmatprep.subr.mxu0 0.0
  %303 = vmatpush1.msra.mxu0 0.0
  %304 = vmatprep.subr.mxu0 0.0
  %305 = vmatpush1.msra.mxu0 0.0
  %306 = vmatprep.mubr.f32.mxu0 0.0
  %307 = vmatmul.mubr.f32.gmra.mrb[0].mxu0 %v231
  %v308 = vpop.f32.mrb[0].mxu0
  %v309 = vadd.f32 0.0, %v308
  %v310 = vpop.f32.mrb[0].mxu0
  %311 = vmatprep.mubr.f32.mxu0 0.0
  %312 = vmatmul.mubr.f32.gmra.mrb[0].mxu0 %v234
  %v313 = vpop.f32.mrb[0].mxu0
  %v314 = vadd.f32 0.0, %v313
  %v315 = vpop.f32.mrb[0].mxu0
  %316 = vmatprep.mubr.f32.mxu0 0.0
  %317 = vmatmul.mubr.f32.gmra.mrb[0].mxu0 %v237
  %v318 = vpop.f32.mrb[0].mxu0
  %v319 = vadd.f32 0.0, %v318
  %v320 = vpop.f32.mrb[0].mxu0
  %321 = vmatprep.mubr.f32.mxu0 0.0
  %322 = vmatmul.mubr.f32.gmra.mrb[0].mxu0 %v240
  %v323 = vpop.f32.mrb[0].mxu0
  %v324 = vadd.f32 0.0, %v323
  %v325 = vpop.f32.mrb[0].mxu0
  %326 = vdwg.mxu0
  %v327 = vmax.f32 %v309, 0.0
  %v328 = vmax.f32 %v314, 0.0
  %v329 = vmax.f32 %v319, 0.0
  %v330 = vmax.f32 %v324, 0.0
  %s331 = scalar_lea.vmem %s1, 96
  %v332 = vld [vmem:[%s331] sm:$0xff]
  %v333 = vld [vmem:[%s331 + $0x8] sm:$0xff]
  %v334 = vld [vmem:[%s331 + $0x10] sm:$0xff]
  %v335 = vld [vmem:[%s331 + $0x18] sm:$0xff]
  %v337 = vsel %vm123, %v332, 0
  %v340 = vsel %vm123, %v333, 0
  %v343 = vsel %vm123, %v334, 0
  %v346 = vsel %vm123, %v335, 0
  %348 = vmatprep.subr.mxu0 0.0
  %349 = vmatpush1.msra.mxu0 %v327
  %350 = vmatprep.subr.mxu0 0.0
  %351 = vmatpush1.msra.mxu0 %v328
  %352 = vmatprep.subr.mxu0 0.0
  %353 = vmatpush1.msra.mxu0 %v329
  %354 = vmatprep.subr.mxu0 0.0
  %355 = vmatpush1.msra.mxu0 %v330
  %356 = vmatprep.subr.mxu0 0.0
  %357 = vmatpush1.msra.mxu0 0.0
  %358 = vmatprep.subr.mxu0 0.0
  %359 = vmatpush1.msra.mxu0 0.0
  %360 = vmatprep.subr.mxu0 0.0
  %361 = vmatpush1.msra.mxu0 0.0
  %362 = vmatprep.subr.mxu0 0.0
  %363 = vmatpush1.msra.mxu0 0.0
  %364 = vmatprep.subr.mxu0 0.0
  %365 = vmatpush1.msra.mxu0 0.0
  %366 = vmatprep.subr.mxu0 0.0
  %367 = vmatpush1.msra.mxu0 0.0
  %368 = vmatprep.subr.mxu0 0.0
  %369 = vmatpush1.msra.mxu0 0.0
  %370 = vmatprep.subr.mxu0 0.0
  %371 = vmatpush1.msra.mxu0 0.0
  %372 = vmatprep.subr.mxu0 0.0
  %373 = vmatpush1.msra.mxu0 0.0
  %374 = vmatprep.subr.mxu0 0.0
  %375 = vmatpush1.msra.mxu0 0.0
  %376 = vmatprep.subr.mxu0 0.0
  %377 = vmatpush1.msra.mxu0 0.0
  %378 = vmatprep.subr.mxu0 0.0
  %379 = vmatpush1.msra.mxu0 0.0
  %380 = vmatprep.subr.mxu0 0.0
  %381 = vmatpush1.msra.mxu0 0.0
  %382 = vmatprep.subr.mxu0 0.0
  %383 = vmatpush1.msra.mxu0 0.0
  %384 = vmatprep.subr.mxu0 0.0
  %385 = vmatpush1.msra.mxu0 0.0
  %386 = vmatprep.subr.mxu0 0.0
  %387 = vmatpush1.msra.mxu0 0.0
  %388 = vmatprep.subr.mxu0 0.0
  %389 = vmatpush1.msra.mxu0 0.0
  %390 = vmatprep.subr.mxu0 0.0
  %391 = vmatpush1.msra.mxu0 0.0
  %392 = vmatprep.subr.mxu0 0.0
  %393 = vmatpush1.msra.mxu0 0.0
  %394 = vmatprep.subr.mxu0 0.0
  %395 = vmatpush1.msra.mxu0 0.0
  %396 = vmatprep.subr.mxu0 0.0
  %397 = vmatpush1.msra.mxu0 0.0
  %398 = vmatprep.subr.mxu0 0.0
  %399 = vmatpush1.msra.mxu0 0.0
  %400 = vmatprep.subr.mxu0 0.0
  %401 = vmatpush1.msra.mxu0 0.0
  %402 = vmatprep.subr.mxu0 0.0
  %403 = vmatpush1.msra.mxu0 0.0
  %404 = vmatprep.subr.mxu0 0.0
  %405 = vmatpush1.msra.mxu0 0.0
  %406 = vmatprep.subr.mxu0 0.0
  %407 = vmatpush1.msra.mxu0 0.0
  %408 = vmatprep.subr.mxu0 0.0
  %409 = vmatpush1.msra.mxu0 0.0
  %410 = vmatprep.subr.mxu0 0.0
  %411 = vmatpush1.msra.mxu0 0.0
  %412 = vmatprep.mubr.f32.mxu0 0.0
  %413 = vmatmul.mubr.f32.gmra.mrb[0].mxu0 %v337
  %v414 = vpop.f32.mrb[0].mxu0
  %v415 = vadd.f32 0.0, %v414
  %v416 = vpop.f32.mrb[0].mxu0
  %417 = vmatprep.mubr.f32.mxu0 0.0
  %418 = vmatmul.mubr.f32.gmra.mrb[0].mxu0 %v340
  %v419 = vpop.f32.mrb[0].mxu0
  %v420 = vadd.f32 0.0, %v419
  %v421 = vpop.f32.mrb[0].mxu0
  %422 = vmatprep.mubr.f32.mxu0 0.0
  %423 = vmatmul.mubr.f32.gmra.mrb[0].mxu0 %v343
  %v424 = vpop.f32.mrb[0].mxu0
  %v425 = vadd.f32 0.0, %v424
  %v426 = vpop.f32.mrb[0].mxu0
  %427 = vmatprep.mubr.f32.mxu0 0.0
  %428 = vmatmul.mubr.f32.gmra.mrb[0].mxu0 %v346
  %v429 = vpop.f32.mrb[0].mxu0
  %v430 = vadd.f32 0.0, %v429
  %v431 = vpop.f32.mrb[0].mxu0
  %432 = vdwg.mxu0
  %v433 = vmax.f32 %v415, 0.0
  %v434 = vmax.f32 %v420, 0.0
  %v435 = vmax.f32 %v425, 0.0
  %v436 = vmax.f32 %v430, 0.0
  %s437 = scalar_lea.vmem %s1, 128
  %v438 = vld [vmem:[%s437] sm:$0xff]
  %v439 = vld [vmem:[%s437 + $0x8] sm:$0xff]
  %v440 = vld [vmem:[%s437 + $0x10] sm:$0xff]
  %v441 = vld [vmem:[%s437 + $0x18] sm:$0xff]
  %v443 = vsel %vm123, %v438, 0
  %v446 = vsel %vm123, %v439, 0
  %v449 = vsel %vm123, %v440, 0
  %v452 = vsel %vm123, %v441, 0
  %454 = vmatprep.subr.mxu0 0.0
  %455 = vmatpush1.msra.mxu0 %v433
  %456 = vmatprep.subr.mxu0 0.0
  %457 = vmatpush1.msra.mxu0 %v434
  %458 = vmatprep.subr.mxu0 0.0
  %459 = vmatpush1.msra.mxu0 %v435
  %460 = vmatprep.subr.mxu0 0.0
  %461 = vmatpush1.msra.mxu0 %v436
  %462 = vmatprep.subr.mxu0 0.0
  %463 = vmatpush1.msra.mxu0 0.0
  %464 = vmatprep.subr.mxu0 0.0
  %465 = vmatpush1.msra.mxu0 0.0
  %466 = vmatprep.subr.mxu0 0.0
  %467 = vmatpush1.msra.mxu0 0.0
  %468 = vmatprep.subr.mxu0 0.0
  %469 = vmatpush1.msra.mxu0 0.0
  %470 = vmatprep.subr.mxu0 0.0
  %471 = vmatpush1.msra.mxu0 0.0
  %472 = vmatprep.subr.mxu0 0.0
  %473 = vmatpush1.msra.mxu0 0.0
  %474 = vmatprep.subr.mxu0 0.0
  %475 = vmatpush1.msra.mxu0 0.0
  %476 = vmatprep.subr.mxu0 0.0
  %477 = vmatpush1.msra.mxu0 0.0
  %478 = vmatprep.subr.mxu0 0.0
  %479 = vmatpush1.msra.mxu0 0.0
  %480 = vmatprep.subr.mxu0 0.0
  %481 = vmatpush1.msra.mxu0 0.0
  %482 = vmatprep.subr.mxu0 0.0
  %483 = vmatpush1.msra.mxu0 0.0
  %484 = vmatprep.subr.mxu0 0.0
  %485 = vmatpush1.msra.mxu0 0.0
  %486 = vmatprep.subr.mxu0 0.0
  %487 = vmatpush1.msra.mxu0 0.0
  %488 = vmatprep.subr.mxu0 0.0
  %489 = vmatpush1.msra.mxu0 0.0
  %490 = vmatprep.subr.mxu0 0.0
  %491 = vmatpush1.msra.mxu0 0.0
  %492 = vmatprep.subr.mxu0 0.0
  %493 = vmatpush1.msra.mxu0 0.0
  %494 = vmatprep.subr.mxu0 0.0
  %495 = vmatpush1.msra.mxu0 0.0
  %496 = vmatprep.subr.mxu0 0.0
  %497 = vmatpush1.msra.mxu0 0.0
  %498 = vmatprep.subr.mxu0 0.0
  %499 = vmatpush1.msra.mxu0 0.0
  %500 = vmatprep.subr.mxu0 0.0
  %501 = vmatpush1.msra.mxu0 0.0
  %502 = vmatprep.subr.mxu0 0.0
  %503 = vmatpush1.msra.mxu0 0.0
  %504 = vmatprep.subr.mxu0 0.0
  %505 = vmatpush1.msra.mxu0 0.0
  %506 = vmatprep.subr.mxu0 0.0
  %507 = vmatpush1.msra.mxu0 0.0
  %508 = vmatprep.subr.mxu0 0.0
  %509 = vmatpush1.msra.mxu0 0.0
  %510 = vmatprep.subr.mxu0 0.0
  %511 = vmatpush1.msra.mxu0 0.0
  %512 = vmatprep.subr.mxu0 0.0
  %513 = vmatpush1.msra.mxu0 0.0
  %514 = vmatprep.subr.mxu0 0.0
  %515 = vmatpush1.msra.mxu0 0.0
  %516 = vmatprep.subr.mxu0 0.0
  %517 = vmatpush1.msra.mxu0 0.0
  %518 = vmatprep.mubr.f32.mxu0 0.0
  %519 = vmatmul.mubr.f32.gmra.mrb[0].mxu0 %v443
  %v520 = vpop.f32.mrb[0].mxu0
  %v521 = vadd.f32 0.0, %v520
  %v522 = vpop.f32.mrb[0].mxu0
  %523 = vmatprep.mubr.f32.mxu0 0.0
  %524 = vmatmul.mubr.f32.gmra.mrb[0].mxu0 %v446
  %v525 = vpop.f32.mrb[0].mxu0
  %v526 = vadd.f32 0.0, %v525
  %v527 = vpop.f32.mrb[0].mxu0
  %528 = vmatprep.mubr.f32.mxu0 0.0
  %529 = vmatmul.mubr.f32.gmra.mrb[0].mxu0 %v449
  %v530 = vpop.f32.mrb[0].mxu0
  %v531 = vadd.f32 0.0, %v530
  %v532 = vpop.f32.mrb[0].mxu0
  %533 = vmatprep.mubr.f32.mxu0 0.0
  %534 = vmatmul.mubr.f32.gmra.mrb[0].mxu0 %v452
  %v535 = vpop.f32.mrb[0].mxu0
  %v536 = vadd.f32 0.0, %v535
  %v537 = vpop.f32.mrb[0].mxu0
  %538 = vdwg.mxu0
  %v539 = vmax.f32 %v521, 0.0
  %v540 = vmax.f32 %v526, 0.0
  %v541 = vmax.f32 %v531, 0.0
  %v542 = vmax.f32 %v536, 0.0
  %s543 = scalar_lea.vmem %s1, 160
  %v544 = vld [vmem:[%s543] sm:$0xff]
  %v545 = vld [vmem:[%s543 + $0x8] sm:$0xff]
  %v546 = vld [vmem:[%s543 + $0x10] sm:$0xff]
  %v547 = vld [vmem:[%s543 + $0x18] sm:$0xff]
  %v549 = vsel %vm123, %v544, 0
  %v552 = vsel %vm123, %v545, 0
  %v555 = vsel %vm123, %v546, 0
  %v558 = vsel %vm123, %v547, 0
  %560 = vmatprep.subr.mxu0 0.0
  %561 = vmatpush1.msra.mxu0 %v539
  %562 = vmatprep.subr.mxu0 0.0
  %563 = vmatpush1.msra.mxu0 %v540
  %564 = vmatprep.subr.mxu0 0.0
  %565 = vmatpush1.msra.mxu0 %v541
  %566 = vmatprep.subr.mxu0 0.0
  %567 = vmatpush1.msra.mxu0 %v542
  %568 = vmatprep.subr.mxu0 0.0
  %569 = vmatpush1.msra.mxu0 0.0
  %570 = vmatprep.subr.mxu0 0.0
  %571 = vmatpush1.msra.mxu0 0.0
  %572 = vmatprep.subr.mxu0 0.0
  %573 = vmatpush1.msra.mxu0 0.0
  %574 = vmatprep.subr.mxu0 0.0
  %575 = vmatpush1.msra.mxu0 0.0
  %576 = vmatprep.subr.mxu0 0.0
  %577 = vmatpush1.msra.mxu0 0.0
  %578 = vmatprep.subr.mxu0 0.0
  %579 = vmatpush1.msra.mxu0 0.0
  %580 = vmatprep.subr.mxu0 0.0
  %581 = vmatpush1.msra.mxu0 0.0
  %582 = vmatprep.subr.mxu0 0.0
  %583 = vmatpush1.msra.mxu0 0.0
  %584 = vmatprep.subr.mxu0 0.0
  %585 = vmatpush1.msra.mxu0 0.0
  %586 = vmatprep.subr.mxu0 0.0
  %587 = vmatpush1.msra.mxu0 0.0
  %588 = vmatprep.subr.mxu0 0.0
  %589 = vmatpush1.msra.mxu0 0.0
  %590 = vmatprep.subr.mxu0 0.0
  %591 = vmatpush1.msra.mxu0 0.0
  %592 = vmatprep.subr.mxu0 0.0
  %593 = vmatpush1.msra.mxu0 0.0
  %594 = vmatprep.subr.mxu0 0.0
  %595 = vmatpush1.msra.mxu0 0.0
  %596 = vmatprep.subr.mxu0 0.0
  %597 = vmatpush1.msra.mxu0 0.0
  %598 = vmatprep.subr.mxu0 0.0
  %599 = vmatpush1.msra.mxu0 0.0
  %600 = vmatprep.subr.mxu0 0.0
  %601 = vmatpush1.msra.mxu0 0.0
  %602 = vmatprep.subr.mxu0 0.0
  %603 = vmatpush1.msra.mxu0 0.0
  %604 = vmatprep.subr.mxu0 0.0
  %605 = vmatpush1.msra.mxu0 0.0
  %606 = vmatprep.subr.mxu0 0.0
  %607 = vmatpush1.msra.mxu0 0.0
  %608 = vmatprep.subr.mxu0 0.0
  %609 = vmatpush1.msra.mxu0 0.0
  %610 = vmatprep.subr.mxu0 0.0
  %611 = vmatpush1.msra.mxu0 0.0
  %612 = vmatprep.subr.mxu0 0.0
  %613 = vmatpush1.msra.mxu0 0.0
  %614 = vmatprep.subr.mxu0 0.0
  %615 = vmatpush1.msra.mxu0 0.0
  %616 = vmatprep.subr.mxu0 0.0
  %617 = vmatpush1.msra.mxu0 0.0
  %618 = vmatprep.subr.mxu0 0.0
  %619 = vmatpush1.msra.mxu0 0.0
  %620 = vmatprep.subr.mxu0 0.0
  %621 = vmatpush1.msra.mxu0 0.0
  %622 = vmatprep.subr.mxu0 0.0
  %623 = vmatpush1.msra.mxu0 0.0
  %624 = vmatprep.mubr.f32.mxu0 0.0
  %625 = vmatmul.mubr.f32.gmra.mrb[0].mxu0 %v549
  %v626 = vpop.f32.mrb[0].mxu0
  %v627 = vadd.f32 0.0, %v626
  %v628 = vpop.f32.mrb[0].mxu0
  %629 = vmatprep.mubr.f32.mxu0 0.0
  %630 = vmatmul.mubr.f32.gmra.mrb[0].mxu0 %v552
  %v631 = vpop.f32.mrb[0].mxu0
  %v632 = vpop.f32.mrb[0].mxu0
  %633 = vmatprep.mubr.f32.mxu0 0.0
  %634 = vmatmul.mubr.f32.gmra.mrb[0].mxu0 %v555
  %v635 = vpop.f32.mrb[0].mxu0
  %v636 = vpop.f32.mrb[0].mxu0
  %637 = vmatprep.mubr.f32.mxu0 0.0
  %638 = vmatmul.mubr.f32.gmra.mrb[0].mxu0 %v558
  %v639 = vpop.f32.mrb[0].mxu0
  %v640 = vpop.f32.mrb[0].mxu0
  %641 = vdwg.mxu0
  %642 = vst [vmem:[%s2] sm:$0x1] %v627
  // Predicated region
  $region10: #{net_forward.1} parent=0 // pred_check
    _
  $region11: #{net_forward.1} parent=0 // pred_check_branch
    %644 = sbr.rel (0) target = $region13
  $region12: #{net_forward.1} parent=0 // pred_region
    _
  $region13: #{net_forward.1} parent=0 // pred_fallthru
    _
  // Predicated region
  $region14: #{net_forward.1} parent=0 // pred_check
    _
  $region15: #{net_forward.1} parent=0 // pred_check_branch
    %646 = sbr.rel (0) target = $region17
  $region16: #{net_forward.1} parent=0 // pred_region
    _
  $region17: #{net_forward.1} parent=0 // pred_fallthru
    _

</llo_original>
